<compile_context>
chip_gen: v7x
topology: tpu7x:2x2x1
jax: 0.10.0
libtpu: 0.0.40
codegen_flags: <defaults>
</compile_context>

<pallas_src>
import functools

import jax
import jax.numpy as jnp
from jax.experimental import pallas as pl
from jax.experimental.pallas import tpu as pltpu


def _round_up(x, m):
    return ((x + m - 1) // m) * m


def _vmem_capacity_bytes():
    """Per-core VMEM capacity; conservative (v7x) default if the query fails."""
    try:
        return int(pltpu.get_tpu_info().vmem_capacity_bytes)
    except Exception:
        return 64 << 20


def _supports_single_buffer():
    """True if this Pallas build accepts pipeline_mode=pl.Buffered(1)."""
    try:
        pl.BlockSpec((8, 128), lambda i: (0, 0), pipeline_mode=pl.Buffered(1))
        return True
    except Exception:
        return False


_HAS_BUFFERED1 = _supports_single_buffer()


def _siglip_mlp_kernel(x_ref, w1_ref, b1_ref, w2_ref, b2_ref, o_ref, acc_ref,
                       *, panel, n_panels):
    # Cast activations in-kernel (saves a wrapper-side HBM cast pass).
    x = x_ref[...].astype(w1_ref.dtype)

    # GELU, tanh approximation (matches torch gelu approximate='tanh'):
    # tanh(c*(h + a*h^3)) == tanh(h*(c + c*a*h^2)); tanh rides the EUP.
    c = 0.7978845608028654          # sqrt(2/pi)
    ca = c * 0.044715

    # Statically unrolled panel loop over the intermediate dim (n_panels is
    # small at SigLIP sizes; panel is a multiple of 128 so all slices are
    # lane/sublane aligned -> no layout copies).  Panelizing lets GELU (VPU+EUP)
    # overlap with MXU work of adjacent panels and keeps f32 temps at tm*panel.
    for j in range(n_panels):
        lo = j * panel
        hi = lo + panel
        h = jnp.dot(x, w1_ref[:, lo:hi], preferred_element_type=jnp.float32)
        h = h + b1_ref[:, lo:hi]
        g = 0.5 * h * (1.0 + jnp.tanh(h * (c + ca * (h * h))))
        part = jnp.dot(g.astype(w2_ref.dtype), w2_ref[lo:hi, :],
                       preferred_element_type=jnp.float32)
        if j == 0:
            acc_ref[...] = part
        else:
            acc_ref[...] += part

    o_ref[...] = (acc_ref[...] + b2_ref[...]).astype(o_ref.dtype)


def prepare_siglip_mlp_params(w1, b1, w2, b2, *, compute_dtype=jnp.bfloat16):
    """One-time weight preprocessing (hoisted out of the forward path).

    w1: [H, I] (= fc1.weight.T), b1: [I], w2: [I, H] (= fc2.weight.T), b2: [H].
    Pads I up to a multiple of 128 (zero pad -> exact same output) and casts
    weights to the MXU compute dtype once.
    """
    H, I = w1.shape
    i_pad = _round_up(max(I, 128), 128)

    # Largest panel (multiple of 128, <= 512) that divides the padded I, so the
    # in-kernel panel loop has no ragged tail.
    panel = 128
    for cand in (512, 384, 256, 128):
        if i_pad % cand == 0:
            panel = cand
            break

    if i_pad != I:
        w1 = jnp.pad(w1, ((0, 0), (0, i_pad - I)))
        b1 = jnp.pad(b1, ((0, i_pad - I),))
        w2 = jnp.pad(w2, ((0, i_pad - I), (0, 0)))

    return dict(
        w1=jnp.asarray(w1, compute_dtype),
        b1=jnp.asarray(b1, jnp.float32).reshape(1, i_pad),
        w2=jnp.asarray(w2, compute_dtype),
        b2=jnp.asarray(b2, jnp.float32).reshape(1, H),
        panel=panel,
        compute_dtype=compute_dtype,
    )


def siglip_mlp(x, params, *, tm=None):
    """x: [B, S, H]; params from prepare_siglip_mlp_params -> [B, S, H]."""
    B, S, H = x.shape
    M = B * S
    out_dtype = x.dtype

    w1c, b1c, w2c, b2c = params["w1"], params["b1"], params["w2"], params["b2"]
    panel = params["panel"]
    cdt = params["compute_dtype"]
    i_pad = w1c.shape[1]
    n_panels = i_pad // panel

    vmem_cap = _vmem_capacity_bytes()

    # Generation-aware token tile: 512 on 128-MiB parts (v5e/v6e), 256 on
    # 64-MiB-per-TC parts (v7x).  Shrink for tiny inputs.
    if tm is None:
        tm = 512 if vmem_cap >= (96 << 20) else 256
    tm = max(8, min(tm, _round_up(M, 8)))

    x2d = x.reshape(M, H)               # view only; no pad, no cast (cast in-kernel)
    grid = (pl.cdiv(M, tm),)

    cbytes = jnp.dtype(cdt).itemsize
    xbytes = jnp.dtype(x.dtype).itemsize
    obytes = jnp.dtype(out_dtype).itemsize
    wbufs = 1 if _HAS_BUFFERED1 else 2

    # Explicit scoped-VMEM budget (per core): resident weights/biases,
    # double-buffered x/out tiles, f32 accumulator, per-panel temps + headroom.
    need = (wbufs * 2 * H * i_pad * cbytes        # fc1 + fc2 weights
            + wbufs * (i_pad + H) * 4             # biases (f32)
            + 2 * tm * H * xbytes                 # x tiles
            + 2 * tm * H * obytes                 # out tiles
            + tm * H * 4                          # f32 accumulator scratch
            + tm * panel * (4 + 4 + cbytes))      # panel h/gelu temps + cast
    cap = max(32 << 20, int(0.78 * vmem_cap))     # ~48 MiB on v7x, ~100 MiB on v5e/v6e
    vmem_limit = min(max(int(1.3 * need) + (8 << 20), 32 << 20), cap)

    if _HAS_BUFFERED1:
        def resident(shape):
            return pl.BlockSpec(shape, lambda i: (0,) * len(shape),
                                pipeline_mode=pl.Buffered(1))
    else:
        # Constant index_map still means the weights are DMA'd only once; the
        # second buffer is just VMEM overhead on stacks without Buffered(1).
        def resident(shape):
            return pl.BlockSpec(shape, lambda i: (0,) * len(shape))

    kernel = functools.partial(_siglip_mlp_kernel, panel=panel, n_panels=n_panels)

    out2d = pl.pallas_call(
        kernel,
        out_shape=jax.ShapeDtypeStruct((M, H), out_dtype),
        grid_spec=pltpu.PrefetchScalarGridSpec(
            num_scalar_prefetch=0,
            grid=grid,
            in_specs=[
                pl.BlockSpec((tm, H), lambda i: (i, 0)),   # x tile (streamed)
                resident((H, i_pad)),                      # fc1 weight (VMEM resident)
                resident((1, i_pad)),                      # fc1 bias
                resident((i_pad, H)),                      # fc2 weight (VMEM resident)
                resident((1, H)),                          # fc2 bias
            ],
            out_specs=pl.BlockSpec((tm, H), lambda i: (i, 0)),
            scratch_shapes=[pltpu.VMEM((tm, H), jnp.float32)],
        ),
        compiler_params=pltpu.CompilerParams(
            dimension_semantics=("parallel",),
            vmem_limit_bytes=vmem_limit),
    )(x2d, w1c, b1c, w2c, b2c)

    return out2d.reshape(B, S, H)


def siglip_mlp_ref(x, w1, b1, w2, b2):
    h = jnp.einsum("bsh,hi->bsi", x, w1) + b1
    g = jax.nn.gelu(h, approximate=True)
    return jnp.einsum("bsi,ih->bsh", g, w2) + b2


if __name__ == "__main__":
    # Small config consistent with SiglipMLP: hidden_size=32, intermediate_size=128
    B, S, H, I = 2, 8, 32, 128

    key = jax.random.PRNGKey(0)
    kx, kw1, kb1, kw2, kb2 = jax.random.split(key, 5)

    x = jax.random.normal(kx, (B, S, H), dtype=jnp.float32)
    # deterministic parameter init (synthetic; not a checkpoint load)
    w1 = jax.random.normal(kw1, (H, I), dtype=jnp.float32) * 0.05
    b1 = jax.random.normal(kb1, (I,), dtype=jnp.float32) * 0.01
    w2 = jax.random.normal(kw2, (I, H), dtype=jnp.float32) * 0.05
    b2 = jax.random.normal(kb2, (H,), dtype=jnp.float32) * 0.01

    ref = siglip_mlp_ref(x, w1, b1, w2, b2)

    # f32-compute path: tight numerical check.
    params_f32 = prepare_siglip_mlp_params(w1, b1, w2, b2, compute_dtype=jnp.float32)
    out_f32 = jax.block_until_ready(siglip_mlp(x, params_f32))
    assert out_f32.shape == (B, S, H)
    assert jnp.allclose(out_f32, ref, atol=1e-4, rtol=1e-4), "f32 mismatch vs reference"

    # Default path (bf16 MXU inputs, f32 accumulation): looser tolerance.
    params_bf16 = prepare_siglip_mlp_params(w1, b1, w2, b2)
    out = jax.block_until_ready(siglip_mlp(x, params_bf16))
    assert out.shape == (B, S, H)
    assert jnp.allclose(out, ref, atol=2e-2, rtol=2e-2), "bf16 mismatch vs reference"

    print("KERNEL_OK")
</pallas_src>

<mosaic_0001>
module attributes {stable_mosaic.version = 11 : i64} {
  func.func @_siglip_mlp_kernel(%arg0: i32, %arg1: memref<16x32xf32, #tpu.memory_space<vmem>>, %arg2: memref<32x128xf32, #tpu.memory_space<vmem>>, %arg3: memref<1x128xf32, #tpu.memory_space<vmem>>, %arg4: memref<128x32xf32, #tpu.memory_space<vmem>>, %arg5: memref<1x32xf32, #tpu.memory_space<vmem>>, %arg6: memref<16x32xf32, #tpu.memory_space<vmem>>, %arg7: memref<16x32xf32, #tpu.memory_space<vmem>>) attributes {dimension_semantics = [#tpu.dimension_semantics<parallel>], iteration_bounds = array<i64: 1>, scalar_prefetch = 0 : i64, scratch_operands = 1 : i64, tpu.core_type = #tpu.core_type<tc>, window_params = [{transform_indices = @transform_0, window_bounds = array<i64: 16, 32>}, {pipeline_mode = #tpu.pipeline_mode<synchronous>, transform_indices = @transform_1, window_bounds = array<i64: 32, 128>}, {pipeline_mode = #tpu.pipeline_mode<synchronous>, transform_indices = @transform_2, window_bounds = array<i64: 1, 128>}, {pipeline_mode = #tpu.pipeline_mode<synchronous>, transform_indices = @transform_3, window_bounds = array<i64: 128, 32>}, {pipeline_mode = #tpu.pipeline_mode<synchronous>, transform_indices = @transform_4, window_bounds = array<i64: 1, 32>}, {transform_indices = @transform_5, window_bounds = array<i64: 16, 32>}]} {
    %c0 = arith.constant 0 : index
    %c0_0 = arith.constant 0 : index
    %0 = vector.load %arg1[%c0, %c0_0] : memref<16x32xf32, #tpu.memory_space<vmem>>, vector<16x32xf32>
    %c0_1 = arith.constant 0 : index
    %c0_2 = arith.constant 0 : index
    %1 = vector.load %arg2[%c0_1, %c0_2] : memref<32x128xf32, #tpu.memory_space<vmem>>, vector<32x128xf32>
    %cst = arith.constant dense<0.000000e+00> : vector<16x128xf32>
    %2 = tpu.matmul %0, %1, %cst {dimension_numbers = #tpu.dot_dimension_numbers<[1], [0], [0], [1], [0, 0, 1, 1], [], []>} : vector<16x32xf32>, vector<32x128xf32>, vector<16x128xf32> -> vector<16x128xf32>
    %c0_3 = arith.constant 0 : index
    %c0_4 = arith.constant 0 : index
    %3 = vector.load %arg3[%c0_3, %c0_4] : memref<1x128xf32, #tpu.memory_space<vmem>>, vector<1x128xf32>
    %4 = vector.broadcast %3 : vector<1x128xf32> to vector<16x128xf32>
    %5 = arith.addf %2, %4 : vector<16x128xf32>
    %cst_5 = arith.constant 5.000000e-01 : f32
    %6 = vector.broadcast %cst_5 : f32 to vector<16x128xf32>
    %7 = arith.mulf %6, %5 : vector<16x128xf32>
    %8 = arith.mulf %5, %5 : vector<16x128xf32>
    %cst_6 = arith.constant 0.0356774069 : f32
    %9 = vector.broadcast %cst_6 : f32 to vector<16x128xf32>
    %10 = arith.mulf %9, %8 : vector<16x128xf32>
    %cst_7 = arith.constant 0.797884583 : f32
    %11 = vector.broadcast %cst_7 : f32 to vector<16x128xf32>
    %12 = arith.addf %11, %10 : vector<16x128xf32>
    %13 = arith.mulf %5, %12 : vector<16x128xf32>
    %14 = math.tanh %13 : vector<16x128xf32>
    %cst_8 = arith.constant 1.000000e+00 : f32
    %15 = vector.broadcast %cst_8 : f32 to vector<16x128xf32>
    %16 = arith.addf %15, %14 : vector<16x128xf32>
    %17 = arith.mulf %7, %16 : vector<16x128xf32>
    %c0_9 = arith.constant 0 : index
    %c0_10 = arith.constant 0 : index
    %18 = vector.load %arg4[%c0_9, %c0_10] : memref<128x32xf32, #tpu.memory_space<vmem>>, vector<128x32xf32>
    %cst_11 = arith.constant dense<0.000000e+00> : vector<16x32xf32>
    %19 = tpu.matmul %17, %18, %cst_11 {dimension_numbers = #tpu.dot_dimension_numbers<[1], [0], [0], [1], [0, 0, 1, 1], [], []>} : vector<16x128xf32>, vector<128x32xf32>, vector<16x32xf32> -> vector<16x32xf32>
    %c0_12 = arith.constant 0 : index
    %c0_13 = arith.constant 0 : index
    %20 = vector.load %arg7[%c0_12, %c0_13] : memref<16x32xf32, #tpu.memory_space<vmem>>, vector<16x32xf32>
    tpu.vector_store %arg7[%c0_12, %c0_13], %19 {strides = array<i32>} : memref<16x32xf32, #tpu.memory_space<vmem>>, vector<16x32xf32>,
    %c0_14 = arith.constant 0 : index
    %c0_15 = arith.constant 0 : index
    %21 = vector.load %arg7[%c0_14, %c0_15] : memref<16x32xf32, #tpu.memory_space<vmem>>, vector<16x32xf32>
    %c0_16 = arith.constant 0 : index
    %c0_17 = arith.constant 0 : index
    %22 = vector.load %arg5[%c0_16, %c0_17] : memref<1x32xf32, #tpu.memory_space<vmem>>, vector<1x32xf32>
    %23 = vector.broadcast %22 : vector<1x32xf32> to vector<16x32xf32>
    %24 = arith.addf %21, %23 : vector<16x32xf32>
    %c0_18 = arith.constant 0 : index
    %c0_19 = arith.constant 0 : index
    %25 = vector.load %arg6[%c0_18, %c0_19] : memref<16x32xf32, #tpu.memory_space<vmem>>, vector<16x32xf32>
    tpu.vector_store %arg6[%c0_18, %c0_19], %24 {strides = array<i32>} : memref<16x32xf32, #tpu.memory_space<vmem>>, vector<16x32xf32>,
    return
  }
  func.func @transform_0(%arg0: i32) -> (i32, i32) {
    %c0_i32 = arith.constant 0 : i32
    %c0_i32_0 = arith.constant 0 : i32
    return %arg0, %c0_i32 : i32, i32
  }
  func.func @transform_1(%arg0: i32) -> (i32, i32) {
    %c0_i32 = arith.constant 0 : i32
    %c0_i32_0 = arith.constant 0 : i32
    %c0_i32_1 = arith.constant 0 : i32
    return %c0_i32, %c0_i32_0 : i32, i32
  }
  func.func @transform_2(%arg0: i32) -> (i32, i32) {
    %c0_i32 = arith.constant 0 : i32
    %c0_i32_0 = arith.constant 0 : i32
    %c0_i32_1 = arith.constant 0 : i32
    return %c0_i32, %c0_i32_0 : i32, i32
  }
  func.func @transform_3(%arg0: i32) -> (i32, i32) {
    %c0_i32 = arith.constant 0 : i32
    %c0_i32_0 = arith.constant 0 : i32
    %c0_i32_1 = arith.constant 0 : i32
    return %c0_i32, %c0_i32_0 : i32, i32
  }
  func.func @transform_4(%arg0: i32) -> (i32, i32) {
    %c0_i32 = arith.constant 0 : i32
    %c0_i32_0 = arith.constant 0 : i32
    %c0_i32_1 = arith.constant 0 : i32
    return %c0_i32, %c0_i32_0 : i32, i32
  }
  func.func @transform_5(%arg0: i32) -> (i32, i32) {
    %c0_i32 = arith.constant 0 : i32
    %c0_i32_0 = arith.constant 0 : i32
    return %arg0, %c0_i32 : i32, i32
  }
}

</mosaic_0001>

<llo_original>
// kernel: tpu_custom_call.1
$region0: #{tpu_custom_call.1}
  #allocation0 [shape = 'u32[]', space=smem, size = 0x4, offset = 0x4, fixed_abs, tag = 'smem constant byte address 0x4 - core index']
  #allocation1 [shape = 'u32[144,128]{1,0:T(1,128)}', space=vmem, size = 0x12000, scoped, tag = 'internal scratch']
  #allocation2 [shape = 'f32[16,32]{1,0:T(8,128)}', space=vmem, size = 0x2000, scoped, tag = 'scratch operand']
  %s0 = inlined_call_operand.vmem [shape: f32[16,32], index: 0, kind: input, shape index: {}]
  %s1 = inlined_call_operand.vmem [shape: f32[32,128], index: 1, kind: input, shape index: {}]
  %s2 = inlined_call_operand.vmem [shape: f32[1,128], index: 2, kind: input, shape index: {}]
  %s3 = inlined_call_operand.vmem [shape: f32[128,32], index: 3, kind: input, shape index: {}]
  %s4 = inlined_call_operand.vmem [shape: f32[1,32], index: 4, kind: input, shape index: {}]
  %s5 = inlined_call_operand.hbm [shape: f32[16,32], index: 5, kind: output, shape index: {}]
  %s6 = sld [smem:[#allocation0]]
  $region30: #{tpu_custom_call.1} parent=0
    _
  %s8 = ssub.s32 1, %s6
  %s9 = scalar_select 0, %s8, %s6
  $region1: #{tpu_custom_call.1} parent=0
    #allocation3 [shape = 'u8[8192]{0}', space=vmem, size = 0x2000, scoped, tag = 'output window, operand 0, single buffered']
    #allocation4 [shape = 's32[1]{0}', space=sflag, size = 0x4, scoped, tag = 'scoped memory for tpu_custom_call.1']
    %10 = vsyncpa [#allocation4], 0
    // Predicated region
    $region2: #{tpu_custom_call.1} parent=1 // pred_check
      _
    $region3: #{tpu_custom_call.1} parent=1 // pred_check_branch
      %12 = sbr.rel (0) target = $region5
    $region4: #{tpu_custom_call.1} parent=1 // pred_region
      _
    $region5: #{tpu_custom_call.1} parent=1 // pred_fallthru
      _
    // Predicated region
    $region6: #{tpu_custom_call.1} parent=1 // pred_check
      _
    $region7: #{tpu_custom_call.1} parent=1 // pred_check_branch
      %14 = sbr.rel (0) target = $region9
    $region8: #{tpu_custom_call.1} parent=1 // pred_region
      _
    $region9: #{tpu_custom_call.1} parent=1 // pred_fallthru
      _
    // Predicated region
    $region10: #{tpu_custom_call.1} parent=1 // pred_check
      _
    $region11: #{tpu_custom_call.1} parent=1 // pred_check_branch
      %16 = sbr.rel (0) target = $region13
    $region12: #{tpu_custom_call.1} parent=1 // pred_region
      _
    $region13: #{tpu_custom_call.1} parent=1 // pred_fallthru
      _
    // Predicated region
    $region14: #{tpu_custom_call.1} parent=1 // pred_check
      _
    $region15: #{tpu_custom_call.1} parent=1 // pred_check_branch
      %18 = sbr.rel (0) target = $region17
    $region16: #{tpu_custom_call.1} parent=1 // pred_region
      _
    $region17: #{tpu_custom_call.1} parent=1 // pred_fallthru
      _
    // Predicated region
    $region18: #{tpu_custom_call.1} parent=1 // pred_check
      _
    $region19: #{tpu_custom_call.1} parent=1 // pred_check_branch
      %20 = sbr.rel (0) target = $region21
    $region20: #{tpu_custom_call.1} parent=1 // pred_region
      _
    $region21: #{tpu_custom_call.1} parent=1 // pred_fallthru
      _
    %v21 = vld [vmem:[%s0] sm:$0xff]
    %v22 = vld [vmem:[%s0 + $0x8] sm:$0xff]
    %v23 = vld [vmem:[%s1] sm:$0xff]
    %v24 = vld [vmem:[%s1 + $0x8] sm:$0xff]
    %v25 = vld [vmem:[%s1 + $0x10] sm:$0xff]
    %v26 = vld [vmem:[%s1 + $0x18] sm:$0xff]
    %v27 = vld [vmem:[%s2] sm:$0x1]
    %v29 = vlaneseq
    %v30 = vshrl.u32 %v29, 7
    %v31 = vsub.s32 0, %v30
    %v32 = vrot.slane %v27, %v31
    %vm34 = vcmask 261120
    %v36 = vsel %vm34, %v21, 0
    %v39 = vsel %vm34, %v22, 0
    %41 = vmatprep.subr.mxu0 0.0
    %42 = vmatpush1.msra.mxu0 %v23
    %43 = vmatprep.subr.mxu0 0.0
    %44 = vmatpush1.msra.mxu0 %v24
    %45 = vmatprep.subr.mxu0 0.0
    %46 = vmatpush1.msra.mxu0 %v25
    %47 = vmatprep.subr.mxu0 0.0
    %48 = vmatpush1.msra.mxu0 %v26
    %49 = vmatprep.subr.mxu0 0.0
    %50 = vmatpush1.msra.mxu0 0.0
    %51 = vmatprep.subr.mxu0 0.0
    %52 = vmatpush1.msra.mxu0 0.0
    %53 = vmatprep.subr.mxu0 0.0
    %54 = vmatpush1.msra.mxu0 0.0
    %55 = vmatprep.subr.mxu0 0.0
    %56 = vmatpush1.msra.mxu0 0.0
    %57 = vmatprep.subr.mxu0 0.0
    %58 = vmatpush1.msra.mxu0 0.0
    %59 = vmatprep.subr.mxu0 0.0
    %60 = vmatpush1.msra.mxu0 0.0
    %61 = vmatprep.subr.mxu0 0.0
    %62 = vmatpush1.msra.mxu0 0.0
    %63 = vmatprep.subr.mxu0 0.0
    %64 = vmatpush1.msra.mxu0 0.0
    %65 = vmatprep.subr.mxu0 0.0
    %66 = vmatpush1.msra.mxu0 0.0
    %67 = vmatprep.subr.mxu0 0.0
    %68 = vmatpush1.msra.mxu0 0.0
    %69 = vmatprep.subr.mxu0 0.0
    %70 = vmatpush1.msra.mxu0 0.0
    %71 = vmatprep.subr.mxu0 0.0
    %72 = vmatpush1.msra.mxu0 0.0
    %73 = vmatprep.subr.mxu0 0.0
    %74 = vmatpush1.msra.mxu0 0.0
    %75 = vmatprep.subr.mxu0 0.0
    %76 = vmatpush1.msra.mxu0 0.0
    %77 = vmatprep.subr.mxu0 0.0
    %78 = vmatpush1.msra.mxu0 0.0
    %79 = vmatprep.subr.mxu0 0.0
    %80 = vmatpush1.msra.mxu0 0.0
    %81 = vmatprep.subr.mxu0 0.0
    %82 = vmatpush1.msra.mxu0 0.0
    %83 = vmatprep.subr.mxu0 0.0
    %84 = vmatpush1.msra.mxu0 0.0
    %85 = vmatprep.subr.mxu0 0.0
    %86 = vmatpush1.msra.mxu0 0.0
    %87 = vmatprep.subr.mxu0 0.0
    %88 = vmatpush1.msra.mxu0 0.0
    %89 = vmatprep.subr.mxu0 0.0
    %90 = vmatpush1.msra.mxu0 0.0
    %91 = vmatprep.subr.mxu0 0.0
    %92 = vmatpush1.msra.mxu0 0.0
    %93 = vmatprep.subr.mxu0 0.0
    %94 = vmatpush1.msra.mxu0 0.0
    %95 = vmatprep.subr.mxu0 0.0
    %96 = vmatpush1.msra.mxu0 0.0
    %97 = vmatprep.subr.mxu0 0.0
    %98 = vmatpush1.msra.mxu0 0.0
    %99 = vmatprep.subr.mxu0 0.0
    %100 = vmatpush1.msra.mxu0 0.0
    %101 = vmatprep.subr.mxu0 0.0
    %102 = vmatpush1.msra.mxu0 0.0
    %103 = vmatprep.subr.mxu0 0.0
    %104 = vmatpush1.msra.mxu0 0.0
    %105 = vmatprep.mubr.f32.mxu0 0.0
    %106 = vmatmul.mubr.f32.gmra.mrb[0].mxu0 %v36
    %v107 = vpop.f32.mrb[0].mxu0
    %v108 = vadd.f32 %v32, %v107
    %v109 = vpop.f32.mrb[0].mxu0
    %110 = vmatprep.mubr.f32.mxu0 0.0
    %111 = vmatmul.mubr.f32.gmra.mrb[0].mxu0 %v39
    %v112 = vpop.f32.mrb[0].mxu0
    %v113 = vadd.f32 %v32, %v112
    %v114 = vpop.f32.mrb[0].mxu0
    %115 = vdwg.mxu0
    %v116 = vmul.f32 %v108, 0.5
    %v117 = vmul.f32 %v113, 0.5
    %v118 = vmul.f32 %v108, %v108
    %v119 = vmul.f32 %v113, %v113
    %v120 = vmul.f32 %v118, 0.035677407
    %v121 = vmul.f32 %v119, 0.035677407
    %v122 = vadd.f32 %v120, 0.7978846
    %v123 = vadd.f32 %v121, 0.7978846
    %v124 = vmul.f32 %v108, %v122
    %v125 = vmul.f32 %v113, %v123
    %v126 = vtanh.pop %v124
    %v127 = vtanh.pop %v125
    %v128 = vadd.f32 %v126, 1.0
    %v129 = vadd.f32 %v127, 1.0
    %v130 = vmul.f32 %v116, %v128
    %v131 = vmul.f32 %v117, %v129
    %v132 = vld [vmem:[%s3] sm:$0xff]
    %v133 = vld [vmem:[%s3 + $0x8] sm:$0xff]
    %v134 = vld [vmem:[%s3 + $0x10] sm:$0xff]
    %v135 = vld [vmem:[%s3 + $0x18] sm:$0xff]
    %v136 = vld [vmem:[%s3 + $0x20] sm:$0xff]
    %v137 = vld [vmem:[%s3 + $0x28] sm:$0xff]
    %v138 = vld [vmem:[%s3 + $0x30] sm:$0xff]
    %v139 = vld [vmem:[%s3 + $0x38] sm:$0xff]
    %v140 = vld [vmem:[%s3 + $0x40] sm:$0xff]
    %v141 = vld [vmem:[%s3 + $0x48] sm:$0xff]
    %v142 = vld [vmem:[%s3 + $0x50] sm:$0xff]
    %v143 = vld [vmem:[%s3 + $0x58] sm:$0xff]
    %v144 = vld [vmem:[%s3 + $0x60] sm:$0xff]
    %v145 = vld [vmem:[%s3 + $0x68] sm:$0xff]
    %v146 = vld [vmem:[%s3 + $0x70] sm:$0xff]
    %v147 = vld [vmem:[%s3 + $0x78] sm:$0xff]
    %148 = vmatprep.subr.mxu0 0.0
    %149 = vmatpush1.msra.mxu0 %v132
    %150 = vmatprep.subr.mxu0 0.0
    %151 = vmatpush1.msra.mxu0 %v133
    %152 = vmatprep.subr.mxu0 0.0
    %153 = vmatpush1.msra.mxu0 %v134
    %154 = vmatprep.subr.mxu0 0.0
    %155 = vmatpush1.msra.mxu0 %v135
    %156 = vmatprep.subr.mxu0 0.0
    %157 = vmatpush1.msra.mxu0 %v136
    %158 = vmatprep.subr.mxu0 0.0
    %159 = vmatpush1.msra.mxu0 %v137
    %160 = vmatprep.subr.mxu0 0.0
    %161 = vmatpush1.msra.mxu0 %v138
    %162 = vmatprep.subr.mxu0 0.0
    %163 = vmatpush1.msra.mxu0 %v139
    %164 = vmatprep.subr.mxu0 0.0
    %165 = vmatpush1.msra.mxu0 %v140
    %166 = vmatprep.subr.mxu0 0.0
    %167 = vmatpush1.msra.mxu0 %v141
    %168 = vmatprep.subr.mxu0 0.0
    %169 = vmatpush1.msra.mxu0 %v142
    %170 = vmatprep.subr.mxu0 0.0
    %171 = vmatpush1.msra.mxu0 %v143
    %172 = vmatprep.subr.mxu0 0.0
    %173 = vmatpush1.msra.mxu0 %v144
    %174 = vmatprep.subr.mxu0 0.0
    %175 = vmatpush1.msra.mxu0 %v145
    %176 = vmatprep.subr.mxu0 0.0
    %177 = vmatpush1.msra.mxu0 %v146
    %178 = vmatprep.subr.mxu0 0.0
    %179 = vmatpush1.msra.mxu0 %v147
    %180 = vmatprep.subr.mxu0 0.0
    %181 = vmatpush1.msra.mxu0 0.0
    %182 = vmatprep.subr.mxu0 0.0
    %183 = vmatpush1.msra.mxu0 0.0
    %184 = vmatprep.subr.mxu0 0.0
    %185 = vmatpush1.msra.mxu0 0.0
    %186 = vmatprep.subr.mxu0 0.0
    %187 = vmatpush1.msra.mxu0 0.0
    %188 = vmatprep.subr.mxu0 0.0
    %189 = vmatpush1.msra.mxu0 0.0
    %190 = vmatprep.subr.mxu0 0.0
    %191 = vmatpush1.msra.mxu0 0.0
    %192 = vmatprep.subr.mxu0 0.0
    %193 = vmatpush1.msra.mxu0 0.0
    %194 = vmatprep.subr.mxu0 0.0
    %195 = vmatpush1.msra.mxu0 0.0
    %196 = vmatprep.subr.mxu0 0.0
    %197 = vmatpush1.msra.mxu0 0.0
    %198 = vmatprep.subr.mxu0 0.0
    %199 = vmatpush1.msra.mxu0 0.0
    %200 = vmatprep.subr.mxu0 0.0
    %201 = vmatpush1.msra.mxu0 0.0
    %202 = vmatprep.subr.mxu0 0.0
    %203 = vmatpush1.msra.mxu0 0.0
    %204 = vmatprep.subr.mxu0 0.0
    %205 = vmatpush1.msra.mxu0 0.0
    %206 = vmatprep.subr.mxu0 0.0
    %207 = vmatpush1.msra.mxu0 0.0
    %208 = vmatprep.subr.mxu0 0.0
    %209 = vmatpush1.msra.mxu0 0.0
    %210 = vmatprep.subr.mxu0 0.0
    %211 = vmatpush1.msra.mxu0 0.0
    %212 = vmatprep.mubr.f32.mxu0 0.0
    %213 = vmatmul.mubr.f32.gmra.mrb[0].mxu0 %v130
    %v214 = vpop.f32.mrb[0].mxu0
    %v215 = vadd.f32 0.0, %v214
    %v216 = vpop.f32.mrb[0].mxu0
    %217 = vmatprep.mubr.f32.mxu0 0.0
    %218 = vmatmul.mubr.f32.gmra.mrb[0].mxu0 %v131
    %v219 = vpop.f32.mrb[0].mxu0
    %v220 = vadd.f32 0.0, %v219
    %v221 = vpop.f32.mrb[0].mxu0
    %222 = vdwg.mxu0
    %223 = vst.msk [vmem:[#allocation2] sm:$0xff] %vm34, %v215
    %224 = vst.msk [vmem:[#allocation2 + $0x8] sm:$0xff] %vm34, %v220
    %v225 = vld [vmem:[#allocation2] sm:$0xff]
    %v226 = vld [vmem:[#allocation2 + $0x8] sm:$0xff]
    %v227 = vld [vmem:[%s4] sm:$0x1]
    %v229 = vlaneseq
    %v230 = vshrl.u32 %v229, 7
    %v231 = vsub.s32 0, %v230
    %v232 = vrot.slane %v227, %v231
    %v234 = vadd.f32 %v225, %v232
    %v235 = vadd.f32 %v226, %v232
    %236 = vst.msk [vmem:[#allocation3] sm:$0xff] %vm34, %v234
    %237 = vst.msk [vmem:[#allocation3 + $0x8] sm:$0xff] %vm34, %v235
    // Predicated region
    $region22: #{tpu_custom_call.1} parent=1 // pred_check
      _
    $region23: #{tpu_custom_call.1} parent=1 // pred_check_branch
      %239 = sbr.rel (0) target = $region25
    $region24: #{tpu_custom_call.1} parent=1 // pred_region
      %s241 = ssub.s32 256, 256
      %242 = vsyncadd [#allocation4], %s241
      %s243 = sshll.u32 [#allocation3], 4
      %s244 = int_to_ptr.vmem [resolvable:$true] %s243
      %249 = dma.vmem_to_hbm [thread:$0]  %s244, 256, %s5, [#allocation4], 128, 128, 8
    $region25: #{tpu_custom_call.1} parent=1 // pred_fallthru
      _
    // Predicated region
    $region26: #{tpu_custom_call.1} parent=1 // pred_check
      _
    $region27: #{tpu_custom_call.1} parent=1 // pred_check_branch
      %251 = sbr.rel (0) target = $region29
    $region28: #{tpu_custom_call.1} parent=1 // pred_region
      %252 = dma.done [#allocation4], 256
    $region29: #{tpu_custom_call.1} parent=1 // pred_fallthru
      _
    %253 = vsyncpa [#allocation4], 1

</llo_original>
